<compile_context>
chip_gen: v6e
topology: v6e:2x2x1
jax: 0.10.0
libtpu: 0.0.40
codegen_flags: <defaults>
</compile_context>

<pallas_src>
import functools

import jax
import jax.numpy as jnp
from jax.experimental import pallas as pl
from jax.experimental.pallas import tpu as pltpu

IN1, OUT1, OUT2 = 10, 5, 1


def _round_up(v, m):
    return (v + m - 1) // m * m


def mlp_kernel(xT_ref, w1t_ref, b1c_ref, w2c_ref, b2_ref, oT_ref):
    """Fused MLP on one lane-dense batch tile (batch on the 128-lane axis).

    xT_ref : (IN1, TILE_B)  VMEM  input tile, batch on lanes (pipelined).
    w1t_ref: (OUT1, IN1)    VMEM  layer-1 weights (transposed), grid-resident.
    b1c_ref: (OUT1, 1)      VMEM  layer-1 bias column (lane-broadcast add).
    w2c_ref: (OUT1, 1)      VMEM  layer-2 weight column.
    b2_ref : (1,)           SMEM  layer-2 bias scalar.
    oT_ref : (OUT2, TILE_B) VMEM  output tile, batch on lanes.
    """
    # Layer 1 on the MXU: (5,10) @ (10,TILE_B) -> (5,TILE_B); hides under DMA.
    h = jnp.dot(w1t_ref[...], xT_ref[...], preferred_element_type=jnp.float32)
    h = jnp.maximum(h + b1c_ref[...], 0.0)                      # bias + ReLU (VPU)
    # Layer 2: broadcast-mul + 5-wide sublane reduce, then scalar bias.
    out = jnp.sum(h * w2c_ref[...], axis=0, keepdims=True)
    oT_ref[...] = out + b2_ref[0]


@functools.partial(jax.jit, static_argnames=("tile_b",))
def my_model_forward(x, w1, b1, w2, b2, *, tile_b=None):
    """x: (B, 10) f32 -> (B, 1) f32.  w1: (10, 5), b1: (5,), w2: (5,), b2: (1,)."""
    B = x.shape[0]
    if tile_b is None:
        # Amortizes the ~0.35 us per-grid-step cost; ~6 MiB of double-buffered
        # VMEM, inside the scoped default on v5e/v6e/v7x.
        tile_b = 32768
    if tile_b % 128 != 0:
        raise ValueError("tile_b must be a multiple of 128")
    # Clamp for small batches: never pad a tiny batch out to a huge tile, and
    # keep >= 2 grid steps when possible so the 'parallel' axis can shard
    # across both TensorCores on v7x.
    if B > 128:
        tile_b = min(tile_b, _round_up(pl.cdiv(_round_up(B, 128), 2), 128))
    else:
        tile_b = 128
    n_tiles = pl.cdiv(B, tile_b)
    b_pad = n_tiles * tile_b

    # Layout plumbing: batch onto the lane axis, pad to a tile multiple.  With
    # allow_input_fusion on operand 0, XLA may fuse this transpose/pad into the
    # Pallas operand instead of running a separate HBM pass.
    xT = jnp.pad(x.T, ((0, 0), (0, b_pad - B))).astype(jnp.float32)   # (10, B_pad)

    w1t = w1.T.astype(jnp.float32)                   # (OUT1, IN1)
    b1c = b1.reshape(OUT1, 1).astype(jnp.float32)    # (OUT1, 1)
    w2c = w2.reshape(OUT1, 1).astype(jnp.float32)    # (OUT1, 1)
    b2v = b2.reshape(OUT2).astype(jnp.float32)       # (1,)

    outT = pl.pallas_call(
        mlp_kernel,
        out_shape=jax.ShapeDtypeStruct((OUT2, b_pad), jnp.float32),
        grid=(n_tiles,),
        in_specs=[
            pl.BlockSpec((IN1, tile_b), lambda i: (0, i)),   # x tile (pipelined)
            pl.BlockSpec((OUT1, IN1), lambda i: (0, 0)),     # W1^T (fetched once)
            pl.BlockSpec((OUT1, 1), lambda i: (0, 0)),       # b1 column
            pl.BlockSpec((OUT1, 1), lambda i: (0, 0)),       # w2 column
            pl.BlockSpec(memory_space=pltpu.SMEM),           # b2 scalar
        ],
        out_specs=pl.BlockSpec((OUT2, tile_b), lambda i: (0, i)),
        compiler_params=pltpu.CompilerParams(
            dimension_semantics=("parallel",),
            allow_input_fusion=[True, False, False, False, False],
        ),
    )(xT, w1t, b1c, w2c, b2v)

    return outT[0, :B].reshape(B, OUT2)


def init_params(key):
    """Deterministic params matching nn.Linear's uniform(-1/sqrt(fan_in)) init.

    Stored so the math is x @ w1 + b1 / h @ w2 + b2 (PyTorch weights transposed).
    """
    k1, k2, k3, k4 = jax.random.split(key, 4)
    bound1 = 1.0 / (IN1 ** 0.5)
    bound2 = 1.0 / (OUT1 ** 0.5)
    w1 = jax.random.uniform(k1, (IN1, OUT1), jnp.float32, -bound1, bound1)
    b1 = jax.random.uniform(k2, (OUT1,), jnp.float32, -bound1, bound1)
    w2 = jax.random.uniform(k3, (OUT1,), jnp.float32, -bound2, bound2)
    b2 = jax.random.uniform(k4, (OUT2,), jnp.float32, -bound2, bound2)
    return w1, b1, w2, b2


if __name__ == "__main__":
    key = jax.random.PRNGKey(0)
    k_x, k_p = jax.random.split(key)

    batch = 300          # small, deliberately NOT a multiple of 128 (exercises padding
                         # and the >=2-tile clamp: tile_b -> 256, 2-step parallel grid)
    x = jax.random.normal(k_x, (batch, IN1), jnp.float32)
    w1, b1, w2, b2 = init_params(k_p)

    out = my_model_forward(x, w1, b1, w2, b2)
    out = jax.block_until_ready(out)

    # Plain-JAX reference (same math as the PyTorch module).
    ref = jnp.maximum(x @ w1 + b1, 0.0) @ w2.reshape(OUT1, OUT2) + b2
    assert out.shape == (batch, OUT2)
    assert jnp.allclose(out, ref, atol=1e-5, rtol=1e-5)

    print("KERNEL_OK")
</pallas_src>

<mosaic_0001>
module attributes {stable_mosaic.version = 11 : i64} {
  func.func @mlp_kernel(%arg0: i32, %arg1: memref<10x256xf32, #tpu.memory_space<vmem>>, %arg2: memref<5x10xf32, #tpu.memory_space<vmem>>, %arg3: memref<5x1xf32, #tpu.memory_space<vmem>>, %arg4: memref<5x1xf32, #tpu.memory_space<vmem>>, %arg5: memref<1xf32, #tpu.memory_space<smem>>, %arg6: memref<1x256xf32, #tpu.memory_space<vmem>>) attributes {dimension_semantics = [#tpu.dimension_semantics<parallel>], iteration_bounds = array<i64: 2>, scalar_prefetch = 0 : i64, scratch_operands = 0 : i64, tpu.core_type = #tpu.core_type<tc>, window_params = [{transform_indices = @transform_0, window_bounds = array<i64: 10, 256>}, {pipeline_mode = #tpu.pipeline_mode<synchronous>, transform_indices = @transform_1, window_bounds = array<i64: 5, 10>}, {pipeline_mode = #tpu.pipeline_mode<synchronous>, transform_indices = @transform_2, window_bounds = array<i64: 5, 1>}, {pipeline_mode = #tpu.pipeline_mode<synchronous>, transform_indices = @transform_3, window_bounds = array<i64: 5, 1>}, {transform_indices = @transform_4, window_bounds = array<i64: 1>}, {transform_indices = @transform_5, window_bounds = array<i64: 1, 256>}]} {
    %c0 = arith.constant 0 : index
    %c0_0 = arith.constant 0 : index
    %0 = vector.load %arg2[%c0, %c0_0] : memref<5x10xf32, #tpu.memory_space<vmem>>, vector<5x10xf32>
    %c0_1 = arith.constant 0 : index
    %c0_2 = arith.constant 0 : index
    %1 = vector.load %arg1[%c0_1, %c0_2] : memref<10x256xf32, #tpu.memory_space<vmem>>, vector<10x256xf32>
    %cst = arith.constant dense<0.000000e+00> : vector<5x256xf32>
    %2 = tpu.matmul %0, %1, %cst {dimension_numbers = #tpu.dot_dimension_numbers<[1], [0], [0], [1], [0, 0, 1, 1], [], []>} : vector<5x10xf32>, vector<10x256xf32>, vector<5x256xf32> -> vector<5x256xf32>
    %c0_3 = arith.constant 0 : index
    %c0_4 = arith.constant 0 : index
    %3 = vector.load %arg3[%c0_3, %c0_4] : memref<5x1xf32, #tpu.memory_space<vmem>>, vector<5x1xf32>
    %4 = vector.broadcast %3 : vector<5x1xf32> to vector<5x256xf32>
    %5 = arith.addf %2, %4 : vector<5x256xf32>
    %cst_5 = arith.constant 0.000000e+00 : f32
    %6 = vector.broadcast %cst_5 : f32 to vector<5x256xf32>
    %7 = arith.maximumf %5, %6 : vector<5x256xf32>
    %c0_6 = arith.constant 0 : index
    %c0_7 = arith.constant 0 : index
    %8 = vector.load %arg4[%c0_6, %c0_7] : memref<5x1xf32, #tpu.memory_space<vmem>>, vector<5x1xf32>
    %9 = vector.broadcast %8 : vector<5x1xf32> to vector<5x256xf32>
    %10 = arith.mulf %7, %9 : vector<5x256xf32>
    %cst_8 = arith.constant dense<0.000000e+00> : vector<256xf32>
    %11 = vector.multi_reduction <add>, %10, %cst_8 [0] : vector<5x256xf32> to vector<256xf32>
    %12 = vector.shape_cast %11 : vector<256xf32> to vector<1x256xf32>
    %c0_9 = arith.constant 0 : index
    %13 = memref.load %arg5[%c0_9] : memref<1xf32, #tpu.memory_space<smem>>
    %14 = vector.broadcast %13 : f32 to vector<1x256xf32>
    %15 = arith.addf %12, %14 : vector<1x256xf32>
    %c0_10 = arith.constant 0 : index
    %c0_11 = arith.constant 0 : index
    %16 = vector.load %arg6[%c0_10, %c0_11] : memref<1x256xf32, #tpu.memory_space<vmem>>, vector<1x256xf32>
    tpu.vector_store %arg6[%c0_10, %c0_11], %15 {strides = array<i32>} : memref<1x256xf32, #tpu.memory_space<vmem>>, vector<1x256xf32>,
    return
  }
  func.func @transform_0(%arg0: i32) -> (i32, i32) {
    %c0_i32 = arith.constant 0 : i32
    %c0_i32_0 = arith.constant 0 : i32
    return %c0_i32, %arg0 : i32, i32
  }
  func.func @transform_1(%arg0: i32) -> (i32, i32) {
    %c0_i32 = arith.constant 0 : i32
    %c0_i32_0 = arith.constant 0 : i32
    %c0_i32_1 = arith.constant 0 : i32
    return %c0_i32, %c0_i32_0 : i32, i32
  }
  func.func @transform_2(%arg0: i32) -> (i32, i32) {
    %c0_i32 = arith.constant 0 : i32
    %c0_i32_0 = arith.constant 0 : i32
    %c0_i32_1 = arith.constant 0 : i32
    return %c0_i32, %c0_i32_0 : i32, i32
  }
  func.func @transform_3(%arg0: i32) -> (i32, i32) {
    %c0_i32 = arith.constant 0 : i32
    %c0_i32_0 = arith.constant 0 : i32
    %c0_i32_1 = arith.constant 0 : i32
    return %c0_i32, %c0_i32_0 : i32, i32
  }
  func.func @transform_4(%arg0: i32) -> i32 {
    %c0_i32 = arith.constant 0 : i32
    %c0_i32_0 = arith.constant 0 : i32
    return %c0_i32 : i32
  }
  func.func @transform_5(%arg0: i32) -> (i32, i32) {
    %c0_i32 = arith.constant 0 : i32
    %c0_i32_0 = arith.constant 0 : i32
    return %c0_i32, %arg0 : i32, i32
  }
}

</mosaic_0001>

<llo_original>
// kernel: my_model_forward.2
$region0: #{my_model_forward.2}
  #allocation0 [shape = 'u32[]', space=smem, size = 0x4, offset = 0x4, fixed_abs, tag = 'smem constant byte address 0x4 - core index']
  #allocation1 [shape = 'u32[144,128]{1,0:T(1,128)}', space=vmem, size = 0x12000, scoped, tag = 'internal scratch']
  #allocation2 [shape = 'u32[2048]{0}', space=vmem, size = 0x2000, scoped, tag = 'scoped memory for my_model_forward.2']
  #allocation3 [shape = 'u32[2048]{0}', space=vmem, size = 0x2000, scoped, tag = 'scoped memory for my_model_forward.2']
  #allocation4 [shape = 'u32[2048]{0}', space=vmem, size = 0x2000, scoped, tag = 'scoped memory for my_model_forward.2']
  #allocation5 [shape = 'u32[2048]{0}', space=vmem, size = 0x2000, scoped, tag = 'scoped memory for my_model_forward.2']
  #allocation6 [shape = 'u32[2048]{0}', space=vmem, size = 0x2000, scoped, tag = 'scoped memory for my_model_forward.2']
  #allocation7 [shape = 'f32[1]{0:T(128)S(6)}', space=smem, size = 0x200, scoped, tag = 'scoped memory for my_model_forward.2']
  %s0 = inlined_call_operand.vmem [shape: f32[5,10], index: 0, kind: input, shape index: {}]
  %s1 = inlined_call_operand.vmem [shape: f32[5,1], index: 1, kind: input, shape index: {}]
  %s2 = inlined_call_operand.vmem [shape: f32[5,1], index: 2, kind: input, shape index: {}]
  %s3 = inlined_call_operand.<no memory space> [shape: f32[1], index: 3, kind: input, shape index: {}]
  %s4 = inlined_call_operand.hbm [shape: f32[10,300], index: 4, kind: input, shape index: {}]
  %s5 = inlined_call_operand.<no memory space> [shape: f32[], index: 5, kind: input, shape index: {}]
  %s6 = inlined_call_operand.vmem [shape: f32[1,512], index: 6, kind: output, shape index: {}]
  %s7 = sld [smem:[#allocation0]]
  $region57: #{my_model_forward.2} parent=0
    _
  %s9 = ssub.s32 1, %s7
  %s10 = scalar_select 0, %s9, %s7
  %v11 = vstv %s5
  %12 = sst [smem:[#allocation7]] %s3
  $region1: #{my_model_forward.2} parent=0
    #allocation8 [shape = 'u8[32768]{0}', space=vmem, size = 0x8000, scoped, tag = 'operand span for operand 4']
    #allocation9 [shape = 's32[2]{0}', space=sflag, size = 0x8, scoped, tag = 'scoped memory for my_model_forward.2']
    %13 = vsyncpa [#allocation9], 0
    %s14 = scalar_lea.sflag [#allocation9], 1
    %15 = vsyncpa %s14, 0
    loop: start=0, step=1, limit=4
    $region2: #{my_model_forward.2} parent=1 // loop_pre_header
      _
    $region3: #{my_model_forward.2} parent=1 // loop_header
      %s17 = sphi 0, %s21
      %p18 = scmp.ge.s32.totalorder %s17, 4
      %s27 = sphi 0, %s29
      %s30 = sphi 0, %s27
      %s31 = sphi 0, %s30
      %s47 = sphi 0, %s31
      %s51 = sphi 0, %s51
      %s53 = sphi 0, %s51
      %s54 = sphi 0, %s53
      %s68 = sphi 0, %s54
      %s72 = sphi 0, %s72
      %s74 = sphi 0, %s72
      %s75 = sphi 0, %s74
      %s89 = sphi 0, %s75
      %s93 = sphi 0, %s93
      %s95 = sphi 0, %s93
      %s96 = sphi 0, %s95
      %s110 = sphi 0, %s96
      %s114 = sphi 0, %s114
      %s116 = sphi 0, %s114
      %s117 = sphi 0, %s116
      %s131 = sphi 0, %s117
      %s137 = sphi 0, %s139
      %s140 = sphi 0, %s137
      %s141 = sphi 0, %s140
      %s157 = sphi 0, %s141
    $region4: #{my_model_forward.2} parent=1 // loop_header_branch
      %20 = sbr.rel (%p18) target = $region8
    $region5: #{my_model_forward.2} parent=1 // loop_body
      %s22 = ssub.s32 %s17, 1
      %s23 = ssub.s32 %s17, 2
      %s24 = sadd.s32 %s17, 1
      %s25 = ssub.s32 %s17, %s24
      %p26 = scmp.eq.s32.totalorder %s25, 0
      %s28 = sadd.s32 %s27, 1
      %s29 = scalar_select %p26, %s27, %s28
      %p32 = pneg %p26
      %p33 = scmp.eq.s32.totalorder %s17, 1
      %p34 = por %p32, %p33
      %p35 = scmp.ne.s32.totalorder %s27, %s30
      %p36 = scmp.eq.s32.totalorder %s17, 0
      %p37 = por %p35, %p36
      %p38 = scmp.ne.s32.totalorder %s27, %s30
      %p39 = scmp.eq.s32.totalorder %s22, 1
      %p40 = por %p38, %p39
      %p41 = scmp.ne.s32.totalorder %s30, %s31
      %p42 = scmp.eq.s32.totalorder %s22, 0
      %p43 = por %p41, %p42
      %p44 = scmp.ne.s32.totalorder %s30, %s31
      %p45 = scmp.eq.s32.totalorder %s23, 1
      %p46 = por %p44, %p45
      %p48 = scmp.ne.s32.totalorder %s31, %s47
      %p49 = scmp.eq.s32.totalorder %s23, 0
      %p50 = por %p48, %p49
      %s52 = sadd.s32 %s51, 1
      %p55 = scmp.eq.s32.totalorder %s17, 1
      %p56 = scmp.ne.s32.totalorder %s51, %s53
      %p57 = scmp.eq.s32.totalorder %s17, 0
      %p58 = por %p56, %p57
      %p59 = scmp.ne.s32.totalorder %s51, %s53
      %p60 = scmp.eq.s32.totalorder %s22, 1
      %p61 = por %p59, %p60
      %p62 = scmp.ne.s32.totalorder %s53, %s54
      %p63 = scmp.eq.s32.totalorder %s22, 0
      %p64 = por %p62, %p63
      %p65 = scmp.ne.s32.totalorder %s53, %s54
      %p66 = scmp.eq.s32.totalorder %s23, 1
      %p67 = por %p65, %p66
      %p69 = scmp.ne.s32.totalorder %s54, %s68
      %p70 = scmp.eq.s32.totalorder %s23, 0
      %p71 = por %p69, %p70
      %s73 = sadd.s32 %s72, 1
      %p76 = scmp.eq.s32.totalorder %s17, 1
      %p77 = scmp.ne.s32.totalorder %s72, %s74
      %p78 = scmp.eq.s32.totalorder %s17, 0
      %p79 = por %p77, %p78
      %p80 = scmp.ne.s32.totalorder %s72, %s74
      %p81 = scmp.eq.s32.totalorder %s22, 1
      %p82 = por %p80, %p81
      %p83 = scmp.ne.s32.totalorder %s74, %s75
      %p84 = scmp.eq.s32.totalorder %s22, 0
      %p85 = por %p83, %p84
      %p86 = scmp.ne.s32.totalorder %s74, %s75
      %p87 = scmp.eq.s32.totalorder %s23, 1
      %p88 = por %p86, %p87
      %p90 = scmp.ne.s32.totalorder %s75, %s89
      %p91 = scmp.eq.s32.totalorder %s23, 0
      %p92 = por %p90, %p91
      %s94 = sadd.s32 %s93, 1
      %p97 = scmp.eq.s32.totalorder %s17, 1
      %p98 = scmp.ne.s32.totalorder %s93, %s95
      %p99 = scmp.eq.s32.totalorder %s17, 0
      %p100 = por %p98, %p99
      %p101 = scmp.ne.s32.totalorder %s93, %s95
      %p102 = scmp.eq.s32.totalorder %s22, 1
      %p103 = por %p101, %p102
      %p104 = scmp.ne.s32.totalorder %s95, %s96
      %p105 = scmp.eq.s32.totalorder %s22, 0
      %p106 = por %p104, %p105
      %p107 = scmp.ne.s32.totalorder %s95, %s96
      %p108 = scmp.eq.s32.totalorder %s23, 1
      %p109 = por %p107, %p108
      %p111 = scmp.ne.s32.totalorder %s96, %s110
      %p112 = scmp.eq.s32.totalorder %s23, 0
      %p113 = por %p111, %p112
      %s115 = sadd.s32 %s114, 1
      %p118 = scmp.eq.s32.totalorder %s17, 1
      %p119 = scmp.ne.s32.totalorder %s114, %s116
      %p120 = scmp.eq.s32.totalorder %s17, 0
      %p121 = por %p119, %p120
      %p122 = scmp.ne.s32.totalorder %s114, %s116
      %p123 = scmp.eq.s32.totalorder %s22, 1
      %p124 = por %p122, %p123
      %p125 = scmp.ne.s32.totalorder %s116, %s117
      %p126 = scmp.eq.s32.totalorder %s22, 0
      %p127 = por %p125, %p126
      %p128 = scmp.ne.s32.totalorder %s116, %s117
      %p129 = scmp.eq.s32.totalorder %s23, 1
      %p130 = por %p128, %p129
      %p132 = scmp.ne.s32.totalorder %s117, %s131
      %p133 = scmp.eq.s32.totalorder %s23, 0
      %p134 = por %p132, %p133
      %s135 = ssub.s32 %s17, %s24
      %p136 = scmp.eq.s32.totalorder %s135, 0
      %s138 = sadd.s32 %s137, 1
      %s139 = scalar_select %p136, %s137, %s138
      %p142 = pneg %p136
      %p143 = scmp.eq.s32.totalorder %s17, 1
      %p144 = por %p142, %p143
      %p145 = scmp.ne.s32.totalorder %s137, %s140
      %p146 = scmp.eq.s32.totalorder %s17, 0
      %p147 = por %p145, %p146
      %p148 = scmp.ne.s32.totalorder %s137, %s140
      %p149 = scmp.eq.s32.totalorder %s22, 1
      %p150 = por %p148, %p149
      %p151 = scmp.ne.s32.totalorder %s140, %s141
      %p152 = scmp.eq.s32.totalorder %s22, 0
      %p153 = por %p151, %p152
      %p154 = scmp.ne.s32.totalorder %s140, %s141
      %p155 = scmp.eq.s32.totalorder %s23, 1
      %p156 = por %p154, %p155
      %p158 = scmp.ne.s32.totalorder %s141, %s157
      %p159 = scmp.eq.s32.totalorder %s23, 0
      %p160 = por %p158, %p159
      %p161 = scmp.le.s32.totalorder 1, %s17
      %p162 = scmp.lt.s32.totalorder %s17, 3
      %p163 = pnand %p161, %p162
      %p164 = pneg %p163
      // Predicated region
      $region9: #{my_model_forward.2} parent=5 // pred_check
        _
      $region10: #{my_model_forward.2} parent=5 // pred_check_branch
        %166 = sbr.rel (%p163) target = $region12
      $region11: #{my_model_forward.2} parent=5 // pred_region
        %s167 = ssub.s32 %s17, 1
        // Predicated region
        $region13: #{my_model_forward.2} parent=11 // pred_check
          %p168 = pneg %p64
        $region14: #{my_model_forward.2} parent=11 // pred_check_branch
          %170 = sbr.rel (%p168) target = $region16
        $region15: #{my_model_forward.2} parent=11 // pred_region
          _
        $region16: #{my_model_forward.2} parent=11 // pred_fallthru
          _
        // Predicated region
        $region17: #{my_model_forward.2} parent=11 // pred_check
          %p171 = pneg %p85
        $region18: #{my_model_forward.2} parent=11 // pred_check_branch
          %173 = sbr.rel (%p171) target = $region20
        $region19: #{my_model_forward.2} parent=11 // pred_region
          _
        $region20: #{my_model_forward.2} parent=11 // pred_fallthru
          _
        // Predicated region
        $region21: #{my_model_forward.2} parent=11 // pred_check
          %p174 = pneg %p106
        $region22: #{my_model_forward.2} parent=11 // pred_check_branch
          %176 = sbr.rel (%p174) target = $region24
        $region23: #{my_model_forward.2} parent=11 // pred_region
          _
        $region24: #{my_model_forward.2} parent=11 // pred_fallthru
          _
        // Predicated region
        $region25: #{my_model_forward.2} parent=11 // pred_check
          %p177 = pneg %p127
        $region26: #{my_model_forward.2} parent=11 // pred_check_branch
          %179 = sbr.rel (%p177) target = $region28
        $region27: #{my_model_forward.2} parent=11 // pred_region
          _
        $region28: #{my_model_forward.2} parent=11 // pred_fallthru
          _
      $region12: #{my_model_forward.2} parent=5 // pred_fallthru
        _
      %p180 = scmp.lt.s32.totalorder %s17, 2
      // Predicated region
      $region29: #{my_model_forward.2} parent=5 // pred_check
        %p181 = pneg %p180
      $region30: #{my_model_forward.2} parent=5 // pred_check_branch
        %183 = sbr.rel (%p181) target = $region32
      $region31: #{my_model_forward.2} parent=5 // pred_region
        // Predicated region
        $region33: #{my_model_forward.2} parent=31 // pred_check
          %p184 = pneg %p37
        $region34: #{my_model_forward.2} parent=31 // pred_check_branch
          %186 = sbr.rel (%p184) target = $region36
        $region35: #{my_model_forward.2} parent=31 // pred_region
          %s187 = sand.u32 %s27, 1
          %s188 = scalar_lea.sflag [#allocation9], %s187
          %s189 = sand.u32 %s27, 1
          %s190 = smul.addr %s189, 32
          %s191 = scalar_lea.vmem [#allocation8], %s190
          %s192 = smul.u32 2, %s17
          %s193 = ssub.s32 3, %s192
          %p194 = scmp.lt.s32.totalorder %s193, 2
          %s195 = scalar_select %p194, %s193, 2
          %s196 = smul.u32 256, %s195
          %s198 = ssub.s32 512, %s196
          %199 = vsyncadd %s188, %s198
          %p200 = scmp.ne.s32.totalorder 0, %s196
          %s201 = smul.addr %s192, 128
          %s202 = scalar_lea.hbm %s4, %s201
          %s203 = smul.u32 %s195, 8
          %s204 = smul.u32 %s203, 2
          %s205 = sshll.u32 %s191, 4
          %s206 = int_to_ptr.vmem [resolvable:$true] %s205
          %s207 = sshll.u32 %s204, 4
          %211 = dma.hbm_to_vmem [thread:$0]  (%p200), %s202, %s207, %s206, %s188, 384, 256, %s203
        $region36: #{my_model_forward.2} parent=31 // pred_fallthru
          _
      $region32: #{my_model_forward.2} parent=5 // pred_fallthru
        _
      %p212 = scmp.le.s32.totalorder 1, %s17
      %p213 = scmp.lt.s32.totalorder %s17, 3
      %p214 = pnand %p212, %p213
      %p215 = pneg %p214
      // Predicated region
      $region37: #{my_model_forward.2} parent=5 // pred_check
        _
      $region38: #{my_model_forward.2} parent=5 // pred_check_branch
        %217 = sbr.rel (%p214) target = $region40
      $region39: #{my_model_forward.2} parent=5 // pred_region
        #allocation10 [shape = 'u8[16384]{0}', space=vmem, size = 0x4000, dematerialized = true, scoped, tag = 'FusionAdapter Buffer %fusion.1 = f32[10,512]{1,0:T(8,128)} fusion(%param_4.1, %param_5), kind=kLoop, calls=%fused_computation.1.clone, metadata={op_name="jit(my_model_forward)/jit(_pad)/pad" stack_frame_id=8}']
        %s218 = ssub.s32 %s17, 1
        %s219 = sand.u32 %s30, 1
        %s220 = scalar_lea.sflag [#allocation9], %s219
        %s221 = sand.u32 %s30, 1
        %s222 = smul.addr %s221, 32
        %s223 = scalar_lea.vmem [#allocation8], %s222
        // Predicated region
        $region41: #{my_model_forward.2} parent=39 // pred_check
          %p224 = pneg %p43
        $region42: #{my_model_forward.2} parent=39 // pred_check_branch
          %226 = sbr.rel (%p224) target = $region44
        $region43: #{my_model_forward.2} parent=39 // pred_region
          %227 = dma.done %s220, 512
        $region44: #{my_model_forward.2} parent=39 // pred_fallthru
          _
        %s228 = sand.u32 %s30, 1
        %s229 = scalar_lea.sflag [#allocation9], %s228
        %s230 = sand.u32 %s30, 1
        %s231 = smul.addr %s230, 32
        %s232 = scalar_lea.vmem [#allocation8], %s231
        %p233 = pneg %p43
        %p234 = pneg %p40
        %p235 = pneg %p64
        %p236 = pneg %p61
        %p237 = pneg %p85
        %p238 = pneg %p82
        %p239 = pneg %p106
        %p240 = pneg %p103
        %p241 = pneg %p127
        %p242 = pneg %p124
        %p243 = pneg %p153
        %p244 = pneg %p150
        %s245 = smul.u32 2, %s22
        %p246 = scmp.lt.s32.totalorder %s245, 3
        %s247 = scalar_select %p246, %s245, 3
        %s248 = scalar_lea.vmem %s6, %s247
        %s249 = smul.u32 2, %s22
        %s250 = ssub.s32 3, %s249
        %p251 = scmp.lt.s32.totalorder %s250, 2
        %s252 = scalar_select %p251, %s250, 2
        %s253 = smul.u32 256, %s252
        %s254 = smul.u32 2, %s22
        %p255 = scmp.lt.s32.totalorder %s254, 3
        %s256 = scalar_select %p255, %s254, 3
        %s257 = scalar_lea.vmem %s6, %s256
        %s258 = smul.u32 2, %s22
        %v259 = vld [vmem:[%s223] sm:$0xff]
        %s260 = ssub.s32 2, %s249
        %v261 = vstv %s260
        %vm262 = vcmp.lt.s32.totalorder %v261, 0
        %v263 = vsel %vm262, %v11, %v259
        %v264 = vlaneseq
        %v265 = vshrl.u32 %v264, 7
        %vm267 = vcmp.lt.s32.totalorder %v265, 10
        %v268 = vsel %vm267, %v263, %v11
        %s269 = smul.addr %s249, 128
        %v270 = vlaneseq
        %v271 = vand.u32 %v270, 127
        %v272 = vstv %s269
        %v273 = vadd.s32 %v271, %v272
        %vm274 = vcmp.lt.s32.totalorder %v273, 300
        %v275 = vsel %vm274, %v268, %v11
        %s277 = ssub.s32 256, 1
        %278 = vst [vmem:[#allocation10] sm:%s277] %v275
        %s279 = scalar_lea.vmem %s223, 8 [#allocation8]
        %v280 = vld [vmem:[%s279] sm:$0xff]
        %s281 = sadd.s32 %s249, 1
        %s282 = ssub.s32 2, %s281
        %v283 = vstv %s282
        %vm284 = vcmp.lt.s32.totalorder %v283, 0
        %v285 = vsel %vm284, %v11, %v280
        %v286 = vlaneseq
        %v287 = vshrl.u32 %v286, 7
        %vm289 = vcmp.lt.s32.totalorder %v287, 10
        %v290 = vsel %vm289, %v285, %v11
        %s291 = sadd.s32 %s249, 1
        %s292 = smul.addr %s291, 128
        %v293 = vlaneseq
        %v294 = vand.u32 %v293, 127
        %v295 = vstv %s292
        %v296 = vadd.s32 %v294, %v295
        %vm297 = vcmp.lt.s32.totalorder %v296, 300
        %v298 = vsel %vm297, %v290, %v11
        %s299 = scalar_lea.vmem [#allocation10], 8
        %s301 = ssub.s32 256, 1
        %302 = vst [vmem:[%s299] sm:%s301] %v298
        %s303 = scalar_lea.vmem %s223, 16 [#allocation8]
        %v304 = vld [vmem:[%s303] sm:$0xff]
        %s305 = ssub.s32 2, %s249
        %v306 = vstv %s305
        %vm307 = vcmp.lt.s32.totalorder %v306, 0
        %v308 = vsel %vm307, %v11, %v304
        %v309 = vlaneseq
        %v310 = vshrl.u32 %v309, 7
        %v311 = vadd.s32 %v310, 8
        %vm312 = vcmp.lt.s32.totalorder %v311, 10
        %v313 = vsel %vm312, %v308, %v11
        %s314 = smul.addr %s249, 128
        %v315 = vlaneseq
        %v316 = vand.u32 %v315, 127
        %v317 = vstv %s314
        %v318 = vadd.s32 %v316, %v317
        %vm319 = vcmp.lt.s32.totalorder %v318, 300
        %v320 = vsel %vm319, %v313, %v11
        %s321 = scalar_lea.vmem [#allocation10], 16
        %s323 = ssub.s32 256, 1
        %324 = vst [vmem:[%s321] sm:%s323] %v320
        %s325 = scalar_lea.vmem %s223, 24 [#allocation8]
        %v326 = vld [vmem:[%s325] sm:$0xff]
        %s327 = sadd.s32 %s249, 1
        %s328 = ssub.s32 2, %s327
        %v329 = vstv %s328
        %vm330 = vcmp.lt.s32.totalorder %v329, 0
        %v331 = vsel %vm330, %v11, %v326
        %v332 = vlaneseq
        %v333 = vshrl.u32 %v332, 7
        %v334 = vadd.s32 %v333, 8
        %vm335 = vcmp.lt.s32.totalorder %v334, 10
        %v336 = vsel %vm335, %v331, %v11
        %s337 = sadd.s32 %s249, 1
        %s338 = smul.addr %s337, 128
        %v339 = vlaneseq
        %v340 = vand.u32 %v339, 127
        %v341 = vstv %s338
        %v342 = vadd.s32 %v340, %v341
        %vm343 = vcmp.lt.s32.totalorder %v342, 300
        %v344 = vsel %vm343, %v336, %v11
        %s345 = scalar_lea.vmem [#allocation10], 24
        %s347 = ssub.s32 256, 1
        %348 = vst [vmem:[%s345] sm:%s347] %v344
        %v349 = vld [vmem:[%s0] sm:$0x1f]
        %v350 = vld [vmem:[#allocation10] sm:$0xff]
        %v351 = vld [vmem:[#allocation10 + $0x8] sm:$0xff]
        %v352 = vld [vmem:[#allocation10 + $0x10] sm:$0x3]
        %v353 = vld [vmem:[#allocation10 + $0x18] sm:$0x3]
        %v354 = vld [vmem:[%s1] sm:$0x1f]
        %356 = vset.pattern.permute.xlu0 0
        %357 = vperm.xlu0 %356, %v354
        %v358 = vpop.permute.xlu0 %357
        %vm360 = vcmask 80896
        %v362 = vsel %vm360, %v349, 0
        %vm364 = vcmask 1041408
        %v366 = vsel %vm364, %v352, 0
        %v369 = vsel %vm364, %v353, 0
        %371 = vmatprep.subr.mxu0 0.0
        %372 = vmatpush1.msra.mxu0 0.0
        %373 = vmatprep.subr.mxu0 0.0
        %374 = vmatpush1.msra.mxu0 0.0
        %375 = vmatprep.subr.mxu0 0.0
        %376 = vmatpush1.msra.mxu0 0.0
        %377 = vmatprep.subr.mxu0 0.0
        %378 = vmatpush1.msra.mxu0 0.0
        %379 = vmatprep.subr.mxu0 0.0
        %380 = vmatpush1.msra.mxu0 0.0
        %381 = vmatprep.subr.mxu0 0.0
        %382 = vmatpush1.msra.mxu0 0.0
        %383 = vmatprep.subr.mxu0 0.0
        %384 = vmatpush1.msra.mxu0 0.0
        %385 = vmatprep.subr.mxu0 0.0
        %386 = vmatpush1.msra.mxu0 0.0
        %387 = vmatprep.subr.mxu0 0.0
        %388 = vmatpush1.msra.mxu0 0.0
        %389 = vmatprep.subr.mxu0 0.0
        %390 = vmatpush1.msra.mxu0 0.0
        %391 = vmatprep.subr.mxu0 0.0
        %392 = vmatpush1.msra.mxu0 0.0
        %393 = vmatprep.subr.mxu0 0.0
        %394 = vmatpush1.msra.mxu0 0.0
        %395 = vmatprep.subr.mxu0 0.0
        %396 = vmatpush1.msra.mxu0 0.0
        %397 = vmatprep.subr.mxu0 0.0
        %398 = vmatpush1.msra.mxu0 0.0
        %399 = vmatprep.subr.mxu0 %v369
        %400 = vmatpush1.msra.mxu0 %v366
        %401 = vmatprep.subr.mxu0 %v351
        %402 = vmatpush1.msra.mxu0 %v350
        %403 = vmatprep.subr.mxu0 0.0
        %404 = vmatpush2.msra.mxu0 0.0
        %405 = vmatprep.subr.mxu0 0.0
        %406 = vmatpush2.msra.mxu0 0.0
        %407 = vmatprep.subr.mxu0 0.0
        %408 = vmatpush2.msra.mxu0 0.0
        %409 = vmatprep.subr.mxu0 0.0
        %410 = vmatpush2.msra.mxu0 0.0
        %411 = vmatprep.subr.mxu0 0.0
        %412 = vmatpush2.msra.mxu0 0.0
        %413 = vmatprep.subr.mxu0 0.0
        %414 = vmatpush2.msra.mxu0 0.0
        %415 = vmatprep.subr.mxu0 0.0
        %416 = vmatpush2.msra.mxu0 0.0
        %417 = vmatprep.subr.mxu0 0.0
        %418 = vmatpush2.msra.mxu0 0.0
        %419 = vmatprep.subr.mxu0 0.0
        %420 = vmatpush2.msra.mxu0 0.0
        %421 = vmatprep.subr.mxu0 0.0
        %422 = vmatpush2.msra.mxu0 0.0
        %423 = vmatprep.subr.mxu0 0.0
        %424 = vmatpush2.msra.mxu0 0.0
        %425 = vmatprep.subr.mxu0 0.0
        %426 = vmatpush2.msra.mxu0 0.0
        %427 = vmatprep.subr.mxu0 0.0
        %428 = vmatpush2.msra.mxu0 0.0
        %429 = vmatprep.subr.mxu0 0.0
        %430 = vmatpush2.msra.mxu0 0.0
        %431 = vmatprep.subr.mxu0 0.0
        %432 = vmatpush2.msra.mxu0 0.0
        %433 = vmatprep.subr.mxu0 0.0
        %434 = vmatpush2.msra.mxu0 0.0
        %435 = vmatprep.mubr.f32.mxu0 0.0
        %436 = vmatmul.mubr.f32.gmra.mxu0 %v362
        %v437 = vpop.f32.mrf.mxu0
        %v438 = vadd.f32 %v358, %v437
        %v439 = vpop.f32.mrf.mxu0
        %v440 = vadd.f32 %v358, %v439
        %441 = vdwg.mxu0
        %v442 = vmax.f32 %v438, 0.0
        %v443 = vmax.f32 %v440, 0.0
        %v444 = vld [vmem:[%s2] sm:$0x1f]
        %446 = vset.pattern.permute.xlu0 0
        %447 = vperm.xlu0 %446, %v444
        %v448 = vpop.permute.xlu0 %447
        %v450 = vmul.f32 %v442, %v448
        %v451 = vmul.f32 %v443, %v448
        %vm452 = vcmask 1044480
        %v453 = vsel %vm452, %v450, 0.0
        %v454 = vrot.slane %v453, 4
        %v455 = vadd.f32 %v453, %v454
        %v456 = vrot.slane %v455, 2
        %v457 = vadd.f32 %v455, %v456
        %v458 = vrot.slane %v457, 1
        %v459 = vadd.f32 %v457, %v458
        %v460 = vsel %vm452, %v451, 0.0
        %v461 = vrot.slane %v460, 4
        %v462 = vadd.f32 %v460, %v461
        %v463 = vrot.slane %v462, 2
        %v464 = vadd.f32 %v462, %v463
        %v465 = vrot.slane %v464, 1
        %v466 = vadd.f32 %v464, %v465
        %s467 = sld [smem:[#allocation7]]
        %v468 = vstv %s467
        %v469 = vadd.f32 %v459, %v468
        %v470 = vadd.f32 %v466, %v468
        %v473 = vcombine.low %v469, %v470
        %v475 = vunpack.c.l.s4 1966171168
        %v476 = vunpack.c.0.s8 %v475
        %v477 = vlaneseq
        %v478 = vshrl.u32 %v477, 7
        %v479 = vsub.s32 %v476, %v478
        %v480 = vrot.slane %v473, %v479
        %v482 = vunpack.c.l.s4 1966171168
        %v483 = vunpack.c.0.s8 %v482
        %v484 = vlaneseq
        %v485 = vshrl.u32 %v484, 7
        %v486 = vsub.s32 %v483, %v485
        %v487 = vrot.slane %v480, %v486
        %v489 = vlaneseq
        %vm490 = vcmp.ge.s32.totalorder %v489, 0
        %vm491 = vcmp.lt.s32.totalorder %v489, 256
        %vm492 = vmand %vm490, %vm491
        %493 = vst.msk [vmem:[%s257] sm:$0x3] %vm492, %v487
        %s494 = smul.u32 2, %s22
        %p495 = scmp.lt.s32.totalorder %s494, 3
        %s496 = scalar_select %p495, %s494, 3
        %s497 = scalar_lea.vmem %s6, %s496
        // Predicated region
        $region45: #{my_model_forward.2} parent=39 // pred_check
          %p498 = pneg %p150
        $region46: #{my_model_forward.2} parent=39 // pred_check_branch
          %500 = sbr.rel (%p498) target = $region48
        $region47: #{my_model_forward.2} parent=39 // pred_region
          %s501 = smul.u32 2, %s22
        $region48: #{my_model_forward.2} parent=39 // pred_fallthru
          _
      $region40: #{my_model_forward.2} parent=5 // pred_fallthru
        _
      %p502 = scmp.le.s32.totalorder 2, %s17
      // Predicated region
      $region49: #{my_model_forward.2} parent=5 // pred_check
        %p503 = pneg %p502
      $region50: #{my_model_forward.2} parent=5 // pred_check_branch
        %505 = sbr.rel (%p503) target = $region52
      $region51: #{my_model_forward.2} parent=5 // pred_region
        %s506 = ssub.s32 %s17, 2
        // Predicated region
        $region53: #{my_model_forward.2} parent=51 // pred_check
          %p507 = pneg %p156
        $region54: #{my_model_forward.2} parent=51 // pred_check_branch
          %509 = sbr.rel (%p507) target = $region56
        $region55: #{my_model_forward.2} parent=51 // pred_region
          %s510 = smul.u32 2, %s23
          %p511 = scmp.lt.s32.totalorder %s510, 3
          %s512 = scalar_select %p511, %s510, 3
          %s513 = scalar_lea.vmem %s6, %s512
        $region56: #{my_model_forward.2} parent=51 // pred_fallthru
          _
      $region52: #{my_model_forward.2} parent=5 // pred_fallthru
        _
    $region6: #{my_model_forward.2} parent=1 // loop_footer
      %s21 = sadd.s32 1, %s17
    $region7: #{my_model_forward.2} parent=1 // loop_footer_branch
      %16 = sbr.rel target = $region3
    $region8: #{my_model_forward.2} parent=1 // loop_exit
      _
    %514 = vsyncpa [#allocation9], 1
    %s515 = scalar_lea.sflag [#allocation9], 1
    %516 = vsyncpa %s515, 1

</llo_original>
